<compile_context>
chip_gen: v7x
topology: tpu7x:2x2x1
jax: 0.10.0
libtpu: 0.0.40
codegen_flags: <defaults>
</compile_context>

<pallas_src>
import jax
import jax.numpy as jnp
from jax import lax
from jax.experimental import pallas as pl
from jax.experimental.pallas import tpu as pltpu

_MiB = 1024 * 1024


def _bilinear_matrix(in_size: int, out_size: int) -> jnp.ndarray:
    """1-D bilinear resize matrix M (out, in): y = M @ x, half-pixel centers
    (align_corners=False) with edge clamp — matches
    torch.nn.functional.interpolate(mode='bilinear', align_corners=False)."""
    i = jnp.arange(out_size, dtype=jnp.float32)
    src = (i + 0.5) * (in_size / out_size) - 0.5
    y0f = jnp.floor(src)
    frac = src - y0f
    y0 = jnp.clip(y0f.astype(jnp.int32), 0, in_size - 1)
    y1 = jnp.clip(y0f.astype(jnp.int32) + 1, 0, in_size - 1)
    return (jax.nn.one_hot(y0, in_size, dtype=jnp.float32) * (1.0 - frac)[:, None]
            + jax.nn.one_hot(y1, in_size, dtype=jnp.float32) * frac[:, None])


def _tpu_vmem_and_cores():
    """Per-core VMEM capacity and an estimate of the TensorCore count."""
    vmem = 128 * _MiB
    try:
        info = pltpu.get_tpu_info()
        v = getattr(info, "vmem_capacity_bytes", None)
        if v:
            vmem = int(v)
    except Exception:
        pass
    # TODO(synk): read the TC count from get_tpu_info() once exposed; for now use
    # the 64 MiB-per-core VMEM signature to detect v7x (2 TCs per chip).
    num_tc = 2 if vmem <= 64 * _MiB else 1
    return vmem, num_tc


def _make_cast_in(in_dtype, cdt):
    """Widen a loaded tile to the compute dtype (integers go via int32)."""
    integer = jnp.issubdtype(in_dtype, jnp.integer)

    def cast(v):
        if integer:
            return v.astype(jnp.int32).astype(cdt)
        return v.astype(cdt)

    return cast


def _make_store(out_dtype):
    """Convert an f32 result tile to the output dtype (round+clip for integers)."""
    if jnp.issubdtype(out_dtype, jnp.integer):
        info = jnp.iinfo(out_dtype)
        lo, hi = float(info.min), float(info.max)

        def store(v):
            v = jnp.clip(jnp.floor(v + 0.5), lo, hi)
            return v.astype(jnp.int32).astype(out_dtype)

        return store
    return lambda v: v.astype(out_dtype)


def _plane_loop(b, fn):
    """Per-plane loop: unrolled for tiny B, fori_loop otherwise (bounded code size)."""
    if b <= 4:
        for i in range(b):
            fn(i)
    else:
        def body(i, carry):
            fn(i)
            return carry
        lax.fori_loop(0, b, body, 0)


def _make_main_kernel(b, h, w, h_out, w_out_p, width_first, cdt, cast_in, store):
    """Resize B whole planes per grid step. The width matmul (lane contraction) is
    one batched MXU GEMM; the height matmul loops per plane. The inter-matmul
    intermediate lives in an f32 VMEM scratch (no full bf16 copy)."""

    def kernel(x_ref, wy_ref, wxt_ref, o_ref, t_ref):
        # x_ref: (b, h, w)  wy_ref: (h_out, h)  wxt_ref: (w, w_out_p)
        # o_ref: (b, h_out, w_out_p)
        # t_ref: (b, h, w_out_p) f32 if width_first else (b, h_out, w) f32
        if width_first:
            # Width resize of all planes as one GEMM with M = b*h (the leading-dim
            # merge is free for 32-bit data when h % 8 == 0, else a VMEM relayout).
            x2 = cast_in(x_ref[...]).reshape(b * h, w)
            t_ref[...] = jnp.dot(
                x2, wxt_ref[...], preferred_element_type=jnp.float32
            ).reshape(b, h, w_out_p)
            wy = wy_ref[...]

            def plane(i):
                o = jnp.dot(wy, t_ref[i].astype(cdt),
                            preferred_element_type=jnp.float32)
                o_ref[i] = store(o)

            _plane_loop(b, plane)
        else:
            # Height resize per plane into the f32 scratch, then one batched GEMM
            # for the width resize with M = b*h_out.
            wy = wy_ref[...]

            def plane(i):
                t_ref[i] = jnp.dot(wy, cast_in(x_ref[i]),
                                   preferred_element_type=jnp.float32)

            _plane_loop(b, plane)
            t2 = t_ref[...].astype(cdt).reshape(b * h_out, w)
            o = jnp.dot(t2, wxt_ref[...], preferred_element_type=jnp.float32)
            o_ref[...] = store(o.reshape(b, h_out, w_out_p))

    return kernel


def _make_htile_kernel(b, cdt, cast_in, store):
    """H_out-tiled fallback (huge planes): height-first, one output-row tile per step."""

    def kernel(x_ref, wy_ref, wxt_ref, o_ref):
        # x_ref: (b, h, w)  wy_ref: (h_tile, h)  wxt_ref: (w, w_out_p)
        # o_ref: (b, h_tile, w_out_p)
        wy = wy_ref[...]
        wxt = wxt_ref[...]

        def plane(i):
            t = jnp.dot(wy, cast_in(x_ref[i]),
                        preferred_element_type=jnp.float32).astype(cdt)
            o_ref[i] = store(jnp.dot(t, wxt, preferred_element_type=jnp.float32))

        _plane_loop(b, plane)

    return kernel


def re_size(x: jnp.ndarray, size, *, compute_dtype=None, _force_h_tile=None
            ) -> jnp.ndarray:
    """x: (N, C, H, W). size: (width, height). Returns (N, C, size[1], size[0]).

    `_force_h_tile` forces the H_out-tiled path with that tile height (testing only).
    """
    n, c, h, w = x.shape
    w_out, h_out = int(size[0]), int(size[1])
    orig_dtype = x.dtype

    # TODO(synk): torchvision Resize on tensors defaults to antialias=True when
    # downscaling; this kernel implements antialias=False bilinear, so integer
    # downscale results may differ from the PyTorch module.
    if compute_dtype is None:
        cdt = jnp.bfloat16 if orig_dtype == jnp.bfloat16 else jnp.float32
    else:
        cdt = jnp.dtype(compute_dtype).type
    out_dtype = orig_dtype  # kernel stores the original dtype (round/clip for ints)

    in_b = jnp.dtype(orig_dtype).itemsize
    out_b = in_b
    cdt_b = jnp.dtype(cdt).itemsize

    # Lane-dense output: pad W_out to a 128 multiple only when the wrapper-side
    # un-pad slice (an HBM copy) is cheap; large outputs keep masked stores instead.
    if w_out % 128 == 0 or w_out >= 512:
        w_out_p = w_out
    else:
        w_out_p = ((w_out + 127) // 128) * 128

    wy_f32 = _bilinear_matrix(h, h_out)                         # (h_out, h)
    wxt_f32 = _bilinear_matrix(w, w_out).T                      # (w, w_out)
    if w_out_p != w_out:
        wxt_f32 = jnp.pad(wxt_f32, ((0, 0), (0, w_out_p - w_out)))
    wy = wy_f32.astype(cdt)
    wxt = wxt_f32.astype(cdt)                                   # (w, w_out_p)

    nc = n * c
    x_flat = x.reshape(nc, h, w)                                # metadata-only reshape

    vmem_cap, num_tc = _tpu_vmem_and_cores()
    budget = vmem_cap // 4                                      # generation-aware

    cast_in = _make_cast_in(orig_dtype, cdt)
    store = _make_store(out_dtype)

    # Static matmul-order choice from per-plane FLOP counts (padded output width).
    cost_width_first = h * w_out_p * (w + h_out)                # (X @ WxT) then Wy @ .
    cost_height_first = h_out * w * (h + w_out_p)               # (Wy @ X) then . @ WxT
    width_first = cost_width_first <= cost_height_first

    t_elems = h * w_out_p if width_first else h_out * w
    weight_bytes = 2 * (h_out * h + w * w_out_p) * cdt_b        # double-buffered
    per_plane = 2 * h * w * in_b + 2 * h_out * w_out_p * out_b + t_elems * 4

    use_h_tile = (_force_h_tile is not None) or (weight_bytes + per_plane > budget)

    if not use_h_tile:
        # ---------------- whole-plane path ----------------
        b = max(1, min(nc, 1024, (budget - weight_bytes) // max(per_plane, 1)))
        if num_tc > 1 and nc >= num_tc:
            # Nudge the grid-step count to a multiple of the TC count (v7x only).
            for bb in range(b, 0, -1):
                if pl.cdiv(nc, bb) % num_tc == 0:
                    b = bb
                    break
        grid = (pl.cdiv(nc, b),)
        est = weight_bytes + b * per_plane + 2 * _MiB

        kernel = _make_main_kernel(b, h, w, h_out, w_out_p, width_first, cdt,
                                   cast_in, store)
        t_shape = (b, h, w_out_p) if width_first else (b, h_out, w)
        grid_spec = pltpu.PrefetchScalarGridSpec(
            num_scalar_prefetch=0,
            grid=grid,
            in_specs=[
                pl.BlockSpec((b, h, w), lambda i: (i, 0, 0)),
                pl.BlockSpec((h_out, h), lambda i: (0, 0)),
                pl.BlockSpec((w, w_out_p), lambda i: (0, 0)),
            ],
            out_specs=pl.BlockSpec((b, h_out, w_out_p), lambda i: (i, 0, 0)),
            scratch_shapes=[pltpu.VMEM(t_shape, jnp.float32)],
        )
        dim_sem = ("parallel",)
    else:
        # ---------------- H_out-tiled path (huge planes) ----------------
        b = 1
        h_out_pad8 = ((h_out + 7) // 8) * 8
        if _force_h_tile is not None:
            h_tile = max(8, ((int(_force_h_tile) + 7) // 8) * 8)
        else:
            fixed = 2 * h * w * in_b + 2 * w * w_out_p * cdt_b
            per_row = 2 * w_out_p * out_b + 2 * h * cdt_b + (w + w_out_p) * 4
            rows = max(8, (budget - fixed) // max(per_row, 1))
            h_tile = max(8, (rows // 8) * 8)
        h_tile = min(h_tile, h_out_pad8)
        grid = (nc, pl.cdiv(h_out, h_tile))
        est = (2 * h * w * in_b + 2 * w * w_out_p * cdt_b + 2 * h_tile * h * cdt_b
               + 2 * h_tile * w_out_p * out_b + h_tile * (w + w_out_p) * 4 + 2 * _MiB)
        # TODO(synk): if even a single input plane exceeds VMEM, add W tiling too.

        kernel = _make_htile_kernel(b, cdt, cast_in, store)
        grid_spec = pltpu.PrefetchScalarGridSpec(
            num_scalar_prefetch=0,
            grid=grid,
            in_specs=[
                pl.BlockSpec((b, h, w), lambda i, j: (i, 0, 0)),   # reused across j
                pl.BlockSpec((h_tile, h), lambda i, j: (j, 0)),
                pl.BlockSpec((w, w_out_p), lambda i, j: (0, 0)),
            ],
            out_specs=pl.BlockSpec((b, h_tile, w_out_p), lambda i, j: (i, j, 0)),
        )
        dim_sem = ("parallel", "arbitrary")

    vmem_limit = int(min(max(2 * est, 32 * _MiB), vmem_cap - 2 * _MiB))
    cparams = pltpu.CompilerParams(dimension_semantics=dim_sem,
                                   vmem_limit_bytes=vmem_limit)

    out_flat = pl.pallas_call(
        kernel,
        out_shape=jax.ShapeDtypeStruct((nc, h_out, w_out_p), out_dtype),
        grid_spec=grid_spec,
        compiler_params=cparams,
    )(x_flat, wy, wxt)

    if w_out_p != w_out:
        out_flat = out_flat[:, :, :w_out]
    return out_flat.reshape(n, c, h_out, w_out)


if __name__ == "__main__":
    key = jax.random.PRNGKey(0)
    HI = jax.lax.Precision.HIGHEST

    # Case 1: f32 downscale (2, 4, 16, 16) -> (12, 8). Height-first batched path,
    # lane-padded output, fori_loop over planes (B > 4).
    x = jax.random.normal(key, (2, 4, 16, 16), dtype=jnp.float32)
    out = jax.block_until_ready(re_size(x, (8, 12)))
    assert out.shape == (2, 4, 12, 8), out.shape
    assert bool(jnp.all(jnp.isfinite(out)))
    ref = jnp.einsum("oh,nchw,pw->ncop", _bilinear_matrix(16, 12), x,
                     _bilinear_matrix(16, 8), precision=HI)
    assert bool(jnp.allclose(out, ref, atol=2e-2, rtol=2e-2)), (
        float(jnp.max(jnp.abs(out - ref))))

    # Case 2: f32 tall upscale (1, 4, 16, 16) -> (160, 8). Width-first batched path.
    x2 = jax.random.normal(jax.random.PRNGKey(0), (1, 4, 16, 16), dtype=jnp.float32)
    out2 = jax.block_until_ready(re_size(x2, (8, 160)))
    assert out2.shape == (1, 4, 160, 8), out2.shape
    assert bool(jnp.all(jnp.isfinite(out2)))
    ref2 = jnp.einsum("oh,nchw,pw->ncop", _bilinear_matrix(16, 160), x2,
                      _bilinear_matrix(16, 8), precision=HI)
    assert bool(jnp.allclose(out2, ref2, atol=2e-2, rtol=2e-2)), (
        float(jnp.max(jnp.abs(out2 - ref2))))

    # Case 3: forced H_out-tiled path (1, 2, 32, 32) -> (64, 256), tile = 16 rows.
    x3 = jax.random.normal(jax.random.PRNGKey(1), (1, 2, 32, 32), dtype=jnp.float32)
    out3 = jax.block_until_ready(re_size(x3, (256, 64), _force_h_tile=16))
    assert out3.shape == (1, 2, 64, 256), out3.shape
    assert bool(jnp.all(jnp.isfinite(out3)))
    ref3 = jnp.einsum("oh,nchw,pw->ncop", _bilinear_matrix(32, 64), x3,
                      _bilinear_matrix(32, 256), precision=HI)
    assert bool(jnp.allclose(out3, ref3, atol=2e-2, rtol=2e-2)), (
        float(jnp.max(jnp.abs(out3 - ref3))))

    # Case 4: uint8 image (2, 3, 16, 16) -> (12, 8): uint8 DMA'd straight in,
    # widened + rounded/clipped inside the kernel, uint8 stored out.
    x4 = jax.random.randint(jax.random.PRNGKey(2), (2, 3, 16, 16), 0, 256,
                            dtype=jnp.int32).astype(jnp.uint8)
    out4 = jax.block_until_ready(re_size(x4, (8, 12)))
    assert out4.shape == (2, 3, 12, 8), out4.shape
    assert out4.dtype == jnp.uint8, out4.dtype
    ref4f = jnp.einsum("oh,nchw,pw->ncop", _bilinear_matrix(16, 12),
                       x4.astype(jnp.float32), _bilinear_matrix(16, 8), precision=HI)
    ref4 = jnp.clip(jnp.floor(ref4f + 0.5), 0, 255).astype(jnp.int32)
    diff4 = jnp.max(jnp.abs(out4.astype(jnp.int32) - ref4))
    assert int(diff4) <= 1, int(diff4)

    print("KERNEL_OK")
</pallas_src>

<mosaic_0001>
module attributes {stable_mosaic.version = 11 : i64} {
  func.func @kernel(%arg0: i32, %arg1: memref<8x16x16xf32, #tpu.memory_space<vmem>>, %arg2: memref<12x16xf32, #tpu.memory_space<vmem>>, %arg3: memref<16x128xf32, #tpu.memory_space<vmem>>, %arg4: memref<8x12x128xf32, #tpu.memory_space<vmem>>, %arg5: memref<8x12x16xf32, #tpu.memory_space<vmem>>) attributes {dimension_semantics = [#tpu.dimension_semantics<parallel>], iteration_bounds = array<i64: 1>, scalar_prefetch = 0 : i64, scratch_operands = 1 : i64, tpu.core_type = #tpu.core_type<tc>, window_params = [{transform_indices = @transform_0, window_bounds = array<i64: 8, 16, 16>}, {pipeline_mode = #tpu.pipeline_mode<synchronous>, transform_indices = @transform_1, window_bounds = array<i64: 12, 16>}, {pipeline_mode = #tpu.pipeline_mode<synchronous>, transform_indices = @transform_2, window_bounds = array<i64: 16, 128>}, {transform_indices = @transform_3, window_bounds = array<i64: 8, 12, 128>}]} {
    %c0 = arith.constant 0 : index
    %c0_0 = arith.constant 0 : index
    %0 = vector.load %arg2[%c0, %c0_0] : memref<12x16xf32, #tpu.memory_space<vmem>>, vector<12x16xf32>
    %c0_i32 = arith.constant 0 : i32
    %c8_i32 = arith.constant 8 : i32
    %1 = arith.addi %c0_i32, %c8_i32 : i32
    %c1_i32 = arith.constant 1 : i32
    scf.for %arg6 = %c0_i32 to %1 step %c1_i32  : i32 {
      %8 = arith.index_cast %arg6 : i32 to index
      %c0_10 = arith.constant 0 : index
      %c0_11 = arith.constant 0 : index
      %9 = vector.load %arg1[%8, %c0_10, %c0_11] : memref<8x16x16xf32, #tpu.memory_space<vmem>>, vector<1x16x16xf32>
      %10 = vector.shape_cast %9 : vector<1x16x16xf32> to vector<16x16xf32>
      %cst_12 = arith.constant dense<0.000000e+00> : vector<12x16xf32>
      %11 = tpu.matmul %0, %10, %cst_12 {dimension_numbers = #tpu.dot_dimension_numbers<[1], [0], [0], [1], [0, 0, 1, 1], [], []>} : vector<12x16xf32>, vector<16x16xf32>, vector<12x16xf32> -> vector<12x16xf32>
      %12 = arith.index_cast %arg6 : i32 to index
      %c0_13 = arith.constant 0 : index
      %c0_14 = arith.constant 0 : index
      %13 = vector.load %arg5[%12, %c0_13, %c0_14] : memref<8x12x16xf32, #tpu.memory_space<vmem>>, vector<1x12x16xf32>
      %14 = vector.shape_cast %13 : vector<1x12x16xf32> to vector<12x16xf32>
      %15 = vector.shape_cast %11 : vector<12x16xf32> to vector<1x12x16xf32>
      tpu.vector_store %arg5[%12, %c0_13, %c0_14], %15 {strides = array<i32>} : memref<8x12x16xf32, #tpu.memory_space<vmem>>, vector<1x12x16xf32>,
    }
    %c8_i32_1 = arith.constant 8 : i32
    %c0_2 = arith.constant 0 : index
    %c0_3 = arith.constant 0 : index
    %c0_4 = arith.constant 0 : index
    %2 = vector.load %arg5[%c0_2, %c0_3, %c0_4] : memref<8x12x16xf32, #tpu.memory_space<vmem>>, vector<8x12x16xf32>
    %3 = vector.shape_cast %2 : vector<8x12x16xf32> to vector<96x16xf32>
    %c0_5 = arith.constant 0 : index
    %c0_6 = arith.constant 0 : index
    %4 = vector.load %arg3[%c0_5, %c0_6] : memref<16x128xf32, #tpu.memory_space<vmem>>, vector<16x128xf32>
    %cst = arith.constant dense<0.000000e+00> : vector<96x128xf32>
    %5 = tpu.matmul %3, %4, %cst {dimension_numbers = #tpu.dot_dimension_numbers<[1], [0], [0], [1], [0, 0, 1, 1], [], []>} : vector<96x16xf32>, vector<16x128xf32>, vector<96x128xf32> -> vector<96x128xf32>
    %6 = vector.shape_cast %5 : vector<96x128xf32> to vector<8x12x128xf32>
    %c0_7 = arith.constant 0 : index
    %c0_8 = arith.constant 0 : index
    %c0_9 = arith.constant 0 : index
    %7 = vector.load %arg4[%c0_7, %c0_8, %c0_9] : memref<8x12x128xf32, #tpu.memory_space<vmem>>, vector<8x12x128xf32>
    tpu.vector_store %arg4[%c0_7, %c0_8, %c0_9], %6 {strides = array<i32>} : memref<8x12x128xf32, #tpu.memory_space<vmem>>, vector<8x12x128xf32>,
    return
  }
  func.func @transform_0(%arg0: i32) -> (i32, i32, i32) {
    %c0_i32 = arith.constant 0 : i32
    %c0_i32_0 = arith.constant 0 : i32
    %c0_i32_1 = arith.constant 0 : i32
    return %arg0, %c0_i32, %c0_i32_0 : i32, i32, i32
  }
  func.func @transform_1(%arg0: i32) -> (i32, i32) {
    %c0_i32 = arith.constant 0 : i32
    %c0_i32_0 = arith.constant 0 : i32
    %c0_i32_1 = arith.constant 0 : i32
    return %c0_i32, %c0_i32_0 : i32, i32
  }
  func.func @transform_2(%arg0: i32) -> (i32, i32) {
    %c0_i32 = arith.constant 0 : i32
    %c0_i32_0 = arith.constant 0 : i32
    %c0_i32_1 = arith.constant 0 : i32
    return %c0_i32, %c0_i32_0 : i32, i32
  }
  func.func @transform_3(%arg0: i32) -> (i32, i32, i32) {
    %c0_i32 = arith.constant 0 : i32
    %c0_i32_0 = arith.constant 0 : i32
    %c0_i32_1 = arith.constant 0 : i32
    return %arg0, %c0_i32, %c0_i32_0 : i32, i32, i32
  }
}

</mosaic_0001>

<llo_original>
// kernel: tpu_custom_call.1
$region0: #{tpu_custom_call.1}
  #allocation0 [shape = 'u32[]', space=smem, size = 0x4, offset = 0x4, fixed_abs, tag = 'smem constant byte address 0x4 - core index']
  #allocation1 [shape = 'u32[144,128]{1,0:T(1,128)}', space=vmem, size = 0x12000, scoped, tag = 'internal scratch']
  #allocation2 [shape = 'f32[8,12,16]{2,1,0:T(8,128)}', space=vmem, size = 0x10000, scoped, tag = 'scratch operand']
  %s0 = inlined_call_operand.hbm [shape: f32[8,16,16], index: 0, kind: input, shape index: {}]
  %s1 = inlined_call_operand.hbm [shape: f32[12,16], index: 1, kind: input, shape index: {}]
  %s2 = inlined_call_operand.hbm [shape: f32[16,128], index: 2, kind: input, shape index: {}]
  %s3 = inlined_call_operand.vmem [shape: f32[8,12,128], index: 3, kind: output, shape index: {}]
  %s4 = sld [smem:[#allocation0]]
  $region41: #{tpu_custom_call.1} parent=0
    _
  %s6 = ssub.s32 1, %s4
  %s7 = scalar_select 0, %s6, %s4
  $region1: #{tpu_custom_call.1} parent=0
    #allocation3 [shape = 'u8[65536]{0}', space=vmem, size = 0x10000, scoped, tag = 'input window, operand 0, single buffered']
    #allocation4 [shape = 's32[1]{0}', space=sflag, size = 0x4, scoped, tag = 'scoped memory for tpu_custom_call.1']
    #allocation5 [shape = 'u8[8192]{0}', space=vmem, size = 0x2000, scoped, tag = 'input window, operand 1, single buffered']
    #allocation6 [shape = 's32[1]{0}', space=sflag, size = 0x4, scoped, tag = 'scoped memory for tpu_custom_call.1']
    #allocation7 [shape = 'u8[8192]{0}', space=vmem, size = 0x2000, scoped, tag = 'input window, operand 2, single buffered']
    %8 = vsyncpa [#allocation4], 0
    %9 = vsyncpa [#allocation6], 0
    // Predicated region
    $region2: #{tpu_custom_call.1} parent=1 // pred_check
      _
    $region3: #{tpu_custom_call.1} parent=1 // pred_check_branch
      %11 = sbr.rel (0) target = $region5
    $region4: #{tpu_custom_call.1} parent=1 // pred_region
      %s13 = ssub.s32 2048, 2048
      %14 = vsyncadd [#allocation4], %s13
      %s15 = sshll.u32 [#allocation3], 4
      %s16 = int_to_ptr.vmem [resolvable:$true] %s15
      %21 = dma.hbm_to_vmem [thread:$0]  %s0, 2048, %s16, [#allocation4], 128, 128, 8
    $region5: #{tpu_custom_call.1} parent=1 // pred_fallthru
      _
    // Predicated region
    $region6: #{tpu_custom_call.1} parent=1 // pred_check
      _
    $region7: #{tpu_custom_call.1} parent=1 // pred_check_branch
      %23 = sbr.rel (0) target = $region9
    $region8: #{tpu_custom_call.1} parent=1 // pred_region
      %s25 = ssub.s32 256, 256
      %26 = vsyncadd [#allocation6], %s25
      %s27 = sshll.u32 [#allocation5], 4
      %s28 = int_to_ptr.vmem [resolvable:$true] %s27
      %33 = dma.hbm_to_vmem [thread:$0]  %s1, 256, %s28, [#allocation6], 128, 128, 8
    $region9: #{tpu_custom_call.1} parent=1 // pred_fallthru
      _
    // Predicated region
    $region10: #{tpu_custom_call.1} parent=1 // pred_check
      _
    $region11: #{tpu_custom_call.1} parent=1 // pred_check_branch
      %35 = sbr.rel (0) target = $region13
    $region12: #{tpu_custom_call.1} parent=1 // pred_region
      %s37 = ssub.s32 256, 256
      %38 = vsyncadd [#allocation6], %s37
      %s39 = sshll.u32 [#allocation7], 4
      %s40 = int_to_ptr.vmem [resolvable:$true] %s39
      %45 = dma.hbm_to_vmem [thread:$0]  %s2, 256, %s40, [#allocation6], 128, 128, 8
    $region13: #{tpu_custom_call.1} parent=1 // pred_fallthru
      _
    // Predicated region
    $region14: #{tpu_custom_call.1} parent=1 // pred_check
      _
    $region15: #{tpu_custom_call.1} parent=1 // pred_check_branch
      %47 = sbr.rel (0) target = $region17
    $region16: #{tpu_custom_call.1} parent=1 // pred_region
      %48 = dma.done [#allocation4], 2048
    $region17: #{tpu_custom_call.1} parent=1 // pred_fallthru
      _
    // Predicated region
    $region18: #{tpu_custom_call.1} parent=1 // pred_check
      _
    $region19: #{tpu_custom_call.1} parent=1 // pred_check_branch
      %50 = sbr.rel (0) target = $region21
    $region20: #{tpu_custom_call.1} parent=1 // pred_region
      %51 = dma.done [#allocation6], 256
    $region21: #{tpu_custom_call.1} parent=1 // pred_fallthru
      _
    // Predicated region
    $region22: #{tpu_custom_call.1} parent=1 // pred_check
      _
    $region23: #{tpu_custom_call.1} parent=1 // pred_check_branch
      %53 = sbr.rel (0) target = $region25
    $region24: #{tpu_custom_call.1} parent=1 // pred_region
      %54 = dma.done [#allocation6], 256
    $region25: #{tpu_custom_call.1} parent=1 // pred_fallthru
      _
    %v55 = vld [vmem:[#allocation5] sm:$0xff]
    %v56 = vld [vmem:[#allocation5 + $0x8] sm:$0xf]
    loop: start=0, step=1, limit=8
    $region26: #{tpu_custom_call.1} parent=1 // loop_pre_header
      _
    $region27: #{tpu_custom_call.1} parent=1 // loop_header
      %s58 = sphi 0, %s62
      %p59 = scmp.ge.s32.totalorder %s58, 8
    $region28: #{tpu_custom_call.1} parent=1 // loop_header_branch
      %61 = sbr.rel (%p59) target = $region32
    $region29: #{tpu_custom_call.1} parent=1 // loop_body
      %s63 = smul.u32 %s58, 16
      %s64 = scalar_lea.vmem [#allocation3], %s63
      %v65 = vld [vmem:[%s64] sm:$0xff]
      %v66 = vld [vmem:[%s64 + $0x8] sm:$0xff]
      %vm67 = vcmask 130048
      %v69 = vsel %vm67, %v55, 0
      %v72 = vsel %vm67, %v56, 0
      %74 = vmatprep.subr.mxu0 0.0
      %75 = vmatpush1.msra.mxu0 %v65
      %76 = vmatprep.subr.mxu0 0.0
      %77 = vmatpush1.msra.mxu0 %v66
      %78 = vmatprep.subr.mxu0 0.0
      %79 = vmatpush1.msra.mxu0 0.0
      %80 = vmatprep.subr.mxu0 0.0
      %81 = vmatpush1.msra.mxu0 0.0
      %82 = vmatprep.subr.mxu0 0.0
      %83 = vmatpush1.msra.mxu0 0.0
      %84 = vmatprep.subr.mxu0 0.0
      %85 = vmatpush1.msra.mxu0 0.0
      %86 = vmatprep.subr.mxu0 0.0
      %87 = vmatpush1.msra.mxu0 0.0
      %88 = vmatprep.subr.mxu0 0.0
      %89 = vmatpush1.msra.mxu0 0.0
      %90 = vmatprep.subr.mxu0 0.0
      %91 = vmatpush1.msra.mxu0 0.0
      %92 = vmatprep.subr.mxu0 0.0
      %93 = vmatpush1.msra.mxu0 0.0
      %94 = vmatprep.subr.mxu0 0.0
      %95 = vmatpush1.msra.mxu0 0.0
      %96 = vmatprep.subr.mxu0 0.0
      %97 = vmatpush1.msra.mxu0 0.0
      %98 = vmatprep.subr.mxu0 0.0
      %99 = vmatpush1.msra.mxu0 0.0
      %100 = vmatprep.subr.mxu0 0.0
      %101 = vmatpush1.msra.mxu0 0.0
      %102 = vmatprep.subr.mxu0 0.0
      %103 = vmatpush1.msra.mxu0 0.0
      %104 = vmatprep.subr.mxu0 0.0
      %105 = vmatpush1.msra.mxu0 0.0
      %106 = vmatprep.subr.mxu0 0.0
      %107 = vmatpush1.msra.mxu0 0.0
      %108 = vmatprep.subr.mxu0 0.0
      %109 = vmatpush1.msra.mxu0 0.0
      %110 = vmatprep.subr.mxu0 0.0
      %111 = vmatpush1.msra.mxu0 0.0
      %112 = vmatprep.subr.mxu0 0.0
      %113 = vmatpush1.msra.mxu0 0.0
      %114 = vmatprep.subr.mxu0 0.0
      %115 = vmatpush1.msra.mxu0 0.0
      %116 = vmatprep.subr.mxu0 0.0
      %117 = vmatpush1.msra.mxu0 0.0
      %118 = vmatprep.subr.mxu0 0.0
      %119 = vmatpush1.msra.mxu0 0.0
      %120 = vmatprep.subr.mxu0 0.0
      %121 = vmatpush1.msra.mxu0 0.0
      %122 = vmatprep.subr.mxu0 0.0
      %123 = vmatpush1.msra.mxu0 0.0
      %124 = vmatprep.subr.mxu0 0.0
      %125 = vmatpush1.msra.mxu0 0.0
      %126 = vmatprep.subr.mxu0 0.0
      %127 = vmatpush1.msra.mxu0 0.0
      %128 = vmatprep.subr.mxu0 0.0
      %129 = vmatpush1.msra.mxu0 0.0
      %130 = vmatprep.subr.mxu0 0.0
      %131 = vmatpush1.msra.mxu0 0.0
      %132 = vmatprep.subr.mxu0 0.0
      %133 = vmatpush1.msra.mxu0 0.0
      %134 = vmatprep.subr.mxu0 0.0
      %135 = vmatpush1.msra.mxu0 0.0
      %136 = vmatprep.subr.mxu0 0.0
      %137 = vmatpush1.msra.mxu0 0.0
      %138 = vmatprep.mubr.f32.mxu0 0.0
      %139 = vmatmul.mubr.f32.gmra.mrb[0].mxu0 %v69
      %v140 = vpop.f32.mrb[0].mxu0
      %v141 = vadd.f32 0.0, %v140
      %v142 = vpop.f32.mrb[0].mxu0
      %143 = vmatprep.mubr.f32.mxu0 0.0
      %144 = vmatmul.mubr.f32.gmra.mrb[0].mxu0 %v72
      %v145 = vpop.f32.mrb[0].mxu0
      %v146 = vadd.f32 0.0, %v145
      %v147 = vpop.f32.mrb[0].mxu0
      %148 = vdwg.mxu0
      %s149 = scalar_lea.vmem [#allocation2], %s63
      %150 = vst.msk [vmem:[%s149] sm:$0xff] %vm67, %v141
      %vm151 = vcmask 125952
      %152 = vst.msk [vmem:[%s149 + $0x8] sm:$0xf] %vm151, %v146
    $region30: #{tpu_custom_call.1} parent=1 // loop_footer
      %s62 = sadd.s32 1, %s58
    $region31: #{tpu_custom_call.1} parent=1 // loop_footer_branch
      %57 = sbr.rel target = $region27
    $region32: #{tpu_custom_call.1} parent=1 // loop_exit
      _
    %v153 = vld [vmem:[#allocation2] sm:$0xff]
    %v154 = vld [vmem:[#allocation2 + $0x8] sm:$0xf]
    %v155 = vld [vmem:[#allocation2 + $0x10] sm:$0xff]
    %v156 = vld [vmem:[#allocation2 + $0x18] sm:$0xf]
    %v157 = vld [vmem:[#allocation2 + $0x20] sm:$0xff]
    %v158 = vld [vmem:[#allocation2 + $0x28] sm:$0xf]
    %v159 = vld [vmem:[#allocation2 + $0x30] sm:$0xff]
    %v160 = vld [vmem:[#allocation2 + $0x38] sm:$0xf]
    %v161 = vld [vmem:[#allocation2 + $0x40] sm:$0xff]
    %v162 = vld [vmem:[#allocation2 + $0x48] sm:$0xf]
    %v163 = vld [vmem:[#allocation2 + $0x50] sm:$0xff]
    %v164 = vld [vmem:[#allocation2 + $0x58] sm:$0xf]
    %v165 = vld [vmem:[#allocation2 + $0x60] sm:$0xff]
    %v166 = vld [vmem:[#allocation2 + $0x68] sm:$0xf]
    %v167 = vld [vmem:[#allocation2 + $0x70] sm:$0xff]
    %v168 = vld [vmem:[#allocation2 + $0x78] sm:$0xf]
    %v185 = vcombine.high %v153, %v153
    %v186 = vcombine.high %v155, %v155
    %v187 = vcombine.high %v157, %v157
    %v188 = vcombine.high %v159, %v159
    %v189 = vcombine.high %v161, %v161
    %v190 = vcombine.high %v163, %v163
    %v191 = vcombine.high %v165, %v165
    %v192 = vcombine.high %v167, %v167
    %v193 = vld [vmem:[#allocation7] sm:$0xff]
    %v194 = vld [vmem:[#allocation7 + $0x8] sm:$0xff]
    %v195 = vcombine.low %v153, %v185
    %v196 = vcombine.low %v154, %v155
    %v197 = vcombine.low %v186, %v156
    %v198 = vcombine.low %v157, %v187
    %v199 = vcombine.low %v158, %v159
    %v200 = vcombine.low %v188, %v160
    %v201 = vcombine.low %v161, %v189
    %v202 = vcombine.low %v162, %v163
    %v203 = vcombine.low %v190, %v164
    %v204 = vcombine.low %v165, %v191
    %v205 = vcombine.low %v166, %v167
    %v206 = vcombine.low %v192, %v168
    %vm207 = vcmask 130048
    %v208 = vsel %vm207, %v195, 0
    %v210 = vsel %vm207, %v196, 0
    %v212 = vsel %vm207, %v197, 0
    %v214 = vsel %vm207, %v198, 0
    %v216 = vsel %vm207, %v199, 0
    %v218 = vsel %vm207, %v200, 0
    %v220 = vsel %vm207, %v201, 0
    %v222 = vsel %vm207, %v202, 0
    %v224 = vsel %vm207, %v203, 0
    %v226 = vsel %vm207, %v204, 0
    %v228 = vsel %vm207, %v205, 0
    %v230 = vsel %vm207, %v206, 0
    %232 = vmatprep.subr.mxu0 0.0
    %233 = vmatpush1.msra.mxu0 %v193
    %234 = vmatprep.subr.mxu0 0.0
    %235 = vmatpush1.msra.mxu0 %v194
    %236 = vmatprep.subr.mxu0 0.0
    %237 = vmatpush1.msra.mxu0 0.0
    %238 = vmatprep.subr.mxu0 0.0
    %239 = vmatpush1.msra.mxu0 0.0
    %240 = vmatprep.subr.mxu0 0.0
    %241 = vmatpush1.msra.mxu0 0.0
    %242 = vmatprep.subr.mxu0 0.0
    %243 = vmatpush1.msra.mxu0 0.0
    %244 = vmatprep.subr.mxu0 0.0
    %245 = vmatpush1.msra.mxu0 0.0
    %246 = vmatprep.subr.mxu0 0.0
    %247 = vmatpush1.msra.mxu0 0.0
    %248 = vmatprep.subr.mxu0 0.0
    %249 = vmatpush1.msra.mxu0 0.0
    %250 = vmatprep.subr.mxu0 0.0
    %251 = vmatpush1.msra.mxu0 0.0
    %252 = vmatprep.subr.mxu0 0.0
    %253 = vmatpush1.msra.mxu0 0.0
    %254 = vmatprep.subr.mxu0 0.0
    %255 = vmatpush1.msra.mxu0 0.0
    %256 = vmatprep.subr.mxu0 0.0
    %257 = vmatpush1.msra.mxu0 0.0
    %258 = vmatprep.subr.mxu0 0.0
    %259 = vmatpush1.msra.mxu0 0.0
    %260 = vmatprep.subr.mxu0 0.0
    %261 = vmatpush1.msra.mxu0 0.0
    %262 = vmatprep.subr.mxu0 0.0
    %263 = vmatpush1.msra.mxu0 0.0
    %264 = vmatprep.subr.mxu0 0.0
    %265 = vmatpush1.msra.mxu0 0.0
    %266 = vmatprep.subr.mxu0 0.0
    %267 = vmatpush1.msra.mxu0 0.0
    %268 = vmatprep.subr.mxu0 0.0
    %269 = vmatpush1.msra.mxu0 0.0
    %270 = vmatprep.subr.mxu0 0.0
    %271 = vmatpush1.msra.mxu0 0.0
    %272 = vmatprep.subr.mxu0 0.0
    %273 = vmatpush1.msra.mxu0 0.0
    %274 = vmatprep.subr.mxu0 0.0
    %275 = vmatpush1.msra.mxu0 0.0
    %276 = vmatprep.subr.mxu0 0.0
    %277 = vmatpush1.msra.mxu0 0.0
    %278 = vmatprep.subr.mxu0 0.0
    %279 = vmatpush1.msra.mxu0 0.0
    %280 = vmatprep.subr.mxu0 0.0
    %281 = vmatpush1.msra.mxu0 0.0
    %282 = vmatprep.subr.mxu0 0.0
    %283 = vmatpush1.msra.mxu0 0.0
    %284 = vmatprep.subr.mxu0 0.0
    %285 = vmatpush1.msra.mxu0 0.0
    %286 = vmatprep.subr.mxu0 0.0
    %287 = vmatpush1.msra.mxu0 0.0
    %288 = vmatprep.subr.mxu0 0.0
    %289 = vmatpush1.msra.mxu0 0.0
    %290 = vmatprep.subr.mxu0 0.0
    %291 = vmatpush1.msra.mxu0 0.0
    %292 = vmatprep.subr.mxu0 0.0
    %293 = vmatpush1.msra.mxu0 0.0
    %294 = vmatprep.subr.mxu0 0.0
    %295 = vmatpush1.msra.mxu0 0.0
    %296 = vmatprep.mubr.f32.mxu0 0.0
    %297 = vmatmul.mubr.f32.gmra.mrb[0].mxu0 %v208
    %v298 = vpop.f32.mrb[0].mxu0
    %v299 = vadd.f32 0.0, %v298
    %v300 = vpop.f32.mrb[0].mxu0
    %301 = vmatprep.mubr.f32.mxu0 0.0
    %302 = vmatmul.mubr.f32.gmra.mrb[0].mxu0 %v210
    %v303 = vpop.f32.mrb[0].mxu0
    %v304 = vadd.f32 0.0, %v303
    %v305 = vpop.f32.mrb[0].mxu0
    %306 = vmatprep.mubr.f32.mxu0 0.0
    %307 = vmatmul.mubr.f32.gmra.mrb[0].mxu0 %v212
    %v308 = vpop.f32.mrb[0].mxu0
    %v309 = vadd.f32 0.0, %v308
    %v310 = vpop.f32.mrb[0].mxu0
    %311 = vmatprep.mubr.f32.mxu0 0.0
    %312 = vmatmul.mubr.f32.gmra.mrb[0].mxu0 %v214
    %v313 = vpop.f32.mrb[0].mxu0
    %v314 = vadd.f32 0.0, %v313
    %v315 = vpop.f32.mrb[0].mxu0
    %316 = vmatprep.mubr.f32.mxu0 0.0
    %317 = vmatmul.mubr.f32.gmra.mrb[0].mxu0 %v216
    %v318 = vpop.f32.mrb[0].mxu0
    %v319 = vadd.f32 0.0, %v318
    %v320 = vpop.f32.mrb[0].mxu0
    %321 = vmatprep.mubr.f32.mxu0 0.0
    %322 = vmatmul.mubr.f32.gmra.mrb[0].mxu0 %v218
    %v323 = vpop.f32.mrb[0].mxu0
    %v324 = vadd.f32 0.0, %v323
    %v325 = vpop.f32.mrb[0].mxu0
    %326 = vmatprep.mubr.f32.mxu0 0.0
    %327 = vmatmul.mubr.f32.gmra.mrb[0].mxu0 %v220
    %v328 = vpop.f32.mrb[0].mxu0
    %v329 = vadd.f32 0.0, %v328
    %v330 = vpop.f32.mrb[0].mxu0
    %331 = vmatprep.mubr.f32.mxu0 0.0
    %332 = vmatmul.mubr.f32.gmra.mrb[0].mxu0 %v222
    %v333 = vpop.f32.mrb[0].mxu0
    %v334 = vadd.f32 0.0, %v333
    %v335 = vpop.f32.mrb[0].mxu0
    %336 = vmatprep.mubr.f32.mxu0 0.0
    %337 = vmatmul.mubr.f32.gmra.mrb[0].mxu0 %v224
    %v338 = vpop.f32.mrb[0].mxu0
    %v339 = vadd.f32 0.0, %v338
    %v340 = vpop.f32.mrb[0].mxu0
    %341 = vmatprep.mubr.f32.mxu0 0.0
    %342 = vmatmul.mubr.f32.gmra.mrb[0].mxu0 %v226
    %v343 = vpop.f32.mrb[0].mxu0
    %v344 = vadd.f32 0.0, %v343
    %v345 = vpop.f32.mrb[0].mxu0
    %346 = vmatprep.mubr.f32.mxu0 0.0
    %347 = vmatmul.mubr.f32.gmra.mrb[0].mxu0 %v228
    %v348 = vpop.f32.mrb[0].mxu0
    %v349 = vadd.f32 0.0, %v348
    %v350 = vpop.f32.mrb[0].mxu0
    %351 = vmatprep.mubr.f32.mxu0 0.0
    %352 = vmatmul.mubr.f32.gmra.mrb[0].mxu0 %v230
    %v353 = vpop.f32.mrb[0].mxu0
    %v354 = vadd.f32 0.0, %v353
    %v355 = vpop.f32.mrb[0].mxu0
    %356 = vdwg.mxu0
    %v369 = vcombine.high %v299, %v299
    %v370 = vcombine.high %v304, %v304
    %v371 = vcombine.high %v309, %v309
    %v372 = vcombine.high %v314, %v314
    %v373 = vcombine.high %v319, %v319
    %v374 = vcombine.high %v324, %v324
    %v375 = vcombine.high %v329, %v329
    %v376 = vcombine.high %v334, %v334
    %v377 = vcombine.high %v339, %v339
    %v378 = vcombine.high %v344, %v344
    %v379 = vcombine.high %v349, %v349
    %v380 = vcombine.high %v354, %v354
    %v385 = vcombine.low %v299, %v369
    %v386 = vcombine.low %v370, %v309
    %v387 = vcombine.low %v314, %v372
    %v388 = vcombine.low %v373, %v324
    %v389 = vcombine.low %v329, %v375
    %v390 = vcombine.low %v376, %v339
    %v391 = vcombine.low %v344, %v378
    %v392 = vcombine.low %v379, %v354
    %401 = vst [vmem:[%s3] sm:$0xff] %v385
    %402 = vst [vmem:[%s3 + $0x8] sm:$0xf] %v304
    %403 = vst [vmem:[%s3 + $0x10] sm:$0xff] %v386
    %404 = vst [vmem:[%s3 + $0x18] sm:$0xf] %v371
    %405 = vst [vmem:[%s3 + $0x20] sm:$0xff] %v387
    %406 = vst [vmem:[%s3 + $0x28] sm:$0xf] %v319
    %407 = vst [vmem:[%s3 + $0x30] sm:$0xff] %v388
    %408 = vst [vmem:[%s3 + $0x38] sm:$0xf] %v374
    %409 = vst [vmem:[%s3 + $0x40] sm:$0xff] %v389
    %410 = vst [vmem:[%s3 + $0x48] sm:$0xf] %v334
    %411 = vst [vmem:[%s3 + $0x50] sm:$0xff] %v390
    %412 = vst [vmem:[%s3 + $0x58] sm:$0xf] %v377
    %413 = vst [vmem:[%s3 + $0x60] sm:$0xff] %v391
    %414 = vst [vmem:[%s3 + $0x68] sm:$0xf] %v349
    %415 = vst [vmem:[%s3 + $0x70] sm:$0xff] %v392
    %416 = vst [vmem:[%s3 + $0x78] sm:$0xf] %v380
    // Predicated region
    $region33: #{tpu_custom_call.1} parent=1 // pred_check
      _
    $region34: #{tpu_custom_call.1} parent=1 // pred_check_branch
      %418 = sbr.rel (0) target = $region36
    $region35: #{tpu_custom_call.1} parent=1 // pred_region
      _
    $region36: #{tpu_custom_call.1} parent=1 // pred_fallthru
      _
    // Predicated region
    $region37: #{tpu_custom_call.1} parent=1 // pred_check
      _
    $region38: #{tpu_custom_call.1} parent=1 // pred_check_branch
      %420 = sbr.rel (0) target = $region40
    $region39: #{tpu_custom_call.1} parent=1 // pred_region
      _
    $region40: #{tpu_custom_call.1} parent=1 // pred_fallthru
      _
    %421 = vsyncpa [#allocation4], 1
    %422 = vsyncpa [#allocation6], 1

</llo_original>
